<compile_context>
chip_gen: v7x
topology: tpu7x:2x2x1
jax: 0.10.0
libtpu: 0.0.40
codegen_flags: <defaults>
</compile_context>

<pallas_src>
import functools

import jax
import jax.numpy as jnp
from jax.experimental import pallas as pl
from jax.experimental.pallas import tpu as pltpu

LANE = 128


def _round_up(x, m):
    return ((x + m - 1) // m) * m


def _linear_kernel(x_ref, w_ref, b_ref, o_ref):
    # x_ref: (TB, H) f32 batch tile (pipelined); cast to bf16 here so the wrapper never
    #        makes an extra HBM pass over the activations.
    # w_ref: (H, C_pad) bf16 weight, resident in VMEM (constant index_map).
    # b_ref: (1, C_pad) f32 bias row, resident in VMEM (block == full array, so the
    #        sublane-1 block shape is legal).
    # o_ref: (TB, C_pad) bf16, lane-dense (128-wide) output block -> unmasked vst.
    x = x_ref[...].astype(w_ref.dtype)
    acc = jnp.dot(x, w_ref[...], preferred_element_type=jnp.float32)  # MXU, f32 accumulate
    o_ref[...] = (acc + b_ref[...]).astype(o_ref.dtype)


def prepare_classifier_params(weight, bias, compute_dtype=jnp.bfloat16):
    """One-time packing of nn.Linear params (hoisted out of the per-call path).

    weight: (C, H) in PyTorch layout; bias: (C,).
    Returns (w_t, b_row): weight transposed to K-major (H, C_pad) bf16, zero-padded along
    the class axis to a 128-lane-dense width, and the bias as a (1, C_pad) f32 row.
    """
    C, H = weight.shape
    C_pad = _round_up(max(C, LANE), LANE)
    w_t = jnp.zeros((H, C_pad), compute_dtype).at[:, :C].set(weight.T.astype(compute_dtype))
    b_row = jnp.zeros((1, C_pad), jnp.float32).at[0, :C].set(bias.astype(jnp.float32))
    return w_t, b_row


@functools.partial(jax.jit, static_argnames=("num_classes", "block_b", "out_dtype"))
def classifier_forward(features, w_t, b_row, *, num_classes, block_b=1024,
                       out_dtype=jnp.float32):
    """features: (B, H) float32; w_t/b_row from prepare_classifier_params.
    Returns logits (B, num_classes) in out_dtype, matching F.linear(features, weight, bias)
    up to bf16 MXU rounding."""
    B, H = features.shape
    Hw, C_pad = w_t.shape
    assert Hw == H, (Hw, H)

    if B == 0:  # degenerate batch guard
        return jnp.zeros((0, num_classes), out_dtype)

    # Batch tile: multiple of 16 sublanes (bf16 packing) capped at block_b; tiny batches get
    # one sublane-aligned block.  No wrapper-side batch padding (Pallas masks the last
    # block's overhang).
    TB = min(_round_up(block_b, 16), _round_up(B, 8))
    grid = (pl.cdiv(B, TB),)

    out = pl.pallas_call(
        _linear_kernel,
        out_shape=jax.ShapeDtypeStruct((B, C_pad), jnp.bfloat16),
        grid_spec=pltpu.PrefetchScalarGridSpec(
            num_scalar_prefetch=0,
            grid=grid,
            in_specs=[
                pl.BlockSpec((TB, H), lambda i: (i, 0)),      # activation tile, pipelined
                pl.BlockSpec((H, C_pad), lambda i: (0, 0)),   # weight resident in VMEM
                pl.BlockSpec((1, C_pad), lambda i: (0, 0)),   # bias resident in VMEM
            ],
            out_specs=pl.BlockSpec((TB, C_pad), lambda i: (i, 0)),
        ),
        compiler_params=pltpu.CompilerParams(
            dimension_semantics=("parallel",),   # shard batch tiles across TCs (v7x megacore)
        ),
    )(features, w_t, b_row)

    # One small fused pass: slice the live class lanes and up-cast to the requested dtype.
    return out[:, :num_classes].astype(out_dtype)


if __name__ == "__main__":
    hidden_dim = 256
    num_classes = 5
    batch = 8

    key = jax.random.PRNGKey(0)
    k_feat, kw, kb = jax.random.split(key, 3)

    features = jax.random.normal(k_feat, (batch, hidden_dim), dtype=jnp.float32)
    # Deterministic init mimicking PyTorch nn.Linear: U(-1/sqrt(fan_in), 1/sqrt(fan_in))
    bound = 1.0 / (hidden_dim ** 0.5)
    weight = jax.random.uniform(kw, (num_classes, hidden_dim), jnp.float32, -bound, bound)
    bias = jax.random.uniform(kb, (num_classes,), jnp.float32, -bound, bound)

    # One-time param packing (transpose + lane padding), reused across forward calls.
    w_t, b_row = prepare_classifier_params(weight, bias)

    logits = classifier_forward(features, w_t, b_row, num_classes=num_classes)
    jax.block_until_ready(logits)

    # Sanity check against plain-JAX f32 reference (same math as PyTorch F.linear).
    ref = features @ weight.T + bias
    assert logits.shape == (batch, num_classes)
    assert logits.dtype == jnp.float32
    max_err = float(jnp.max(jnp.abs(logits - ref)))
    # bf16 MXU inputs + bf16 stored logits with f32 accumulate -> loose tolerance.
    assert jnp.allclose(logits, ref, atol=2e-2, rtol=2e-2), max_err

    print("KERNEL_OK")
</pallas_src>

<mosaic_0001>
module attributes {stable_mosaic.version = 11 : i64} {
  func.func @_linear_kernel(%arg0: i32, %arg1: memref<8x256xf32, #tpu.memory_space<vmem>>, %arg2: memref<256x128xbf16, #tpu.memory_space<vmem>>, %arg3: memref<1x128xf32, #tpu.memory_space<vmem>>, %arg4: memref<8x128xbf16, #tpu.memory_space<vmem>>) attributes {dimension_semantics = [#tpu.dimension_semantics<parallel>], iteration_bounds = array<i64: 1>, scalar_prefetch = 0 : i64, scratch_operands = 0 : i64, tpu.core_type = #tpu.core_type<tc>, window_params = [{transform_indices = @transform_0, window_bounds = array<i64: 8, 256>}, {pipeline_mode = #tpu.pipeline_mode<synchronous>, transform_indices = @transform_1, window_bounds = array<i64: 256, 128>}, {pipeline_mode = #tpu.pipeline_mode<synchronous>, transform_indices = @transform_2, window_bounds = array<i64: 1, 128>}, {transform_indices = @transform_3, window_bounds = array<i64: 8, 128>}]} {
    %c0 = arith.constant 0 : index
    %c0_0 = arith.constant 0 : index
    %0 = vector.load %arg1[%c0, %c0_0] : memref<8x256xf32, #tpu.memory_space<vmem>>, vector<8x256xf32>
    %1 = arith.truncf %0 : vector<8x256xf32> to vector<8x256xbf16>
    %c0_1 = arith.constant 0 : index
    %c0_2 = arith.constant 0 : index
    %2 = vector.load %arg2[%c0_1, %c0_2] : memref<256x128xbf16, #tpu.memory_space<vmem>>, vector<256x128xbf16>
    %cst = arith.constant dense<0.000000e+00> : vector<8x128xf32>
    %3 = tpu.matmul %1, %2, %cst {dimension_numbers = #tpu.dot_dimension_numbers<[1], [0], [0], [1], [0, 0, 1, 1], [], []>} : vector<8x256xbf16>, vector<256x128xbf16>, vector<8x128xf32> -> vector<8x128xf32>
    %c0_3 = arith.constant 0 : index
    %c0_4 = arith.constant 0 : index
    %4 = vector.load %arg3[%c0_3, %c0_4] : memref<1x128xf32, #tpu.memory_space<vmem>>, vector<1x128xf32>
    %5 = vector.broadcast %4 : vector<1x128xf32> to vector<8x128xf32>
    %6 = arith.addf %3, %5 : vector<8x128xf32>
    %7 = arith.truncf %6 : vector<8x128xf32> to vector<8x128xbf16>
    %c0_5 = arith.constant 0 : index
    %c0_6 = arith.constant 0 : index
    %8 = vector.load %arg4[%c0_5, %c0_6] : memref<8x128xbf16, #tpu.memory_space<vmem>>, vector<8x128xbf16>
    tpu.vector_store %arg4[%c0_5, %c0_6], %7 {strides = array<i32>} : memref<8x128xbf16, #tpu.memory_space<vmem>>, vector<8x128xbf16>,
    return
  }
  func.func @transform_0(%arg0: i32) -> (i32, i32) {
    %c0_i32 = arith.constant 0 : i32
    %c0_i32_0 = arith.constant 0 : i32
    return %arg0, %c0_i32 : i32, i32
  }
  func.func @transform_1(%arg0: i32) -> (i32, i32) {
    %c0_i32 = arith.constant 0 : i32
    %c0_i32_0 = arith.constant 0 : i32
    %c0_i32_1 = arith.constant 0 : i32
    return %c0_i32, %c0_i32_0 : i32, i32
  }
  func.func @transform_2(%arg0: i32) -> (i32, i32) {
    %c0_i32 = arith.constant 0 : i32
    %c0_i32_0 = arith.constant 0 : i32
    %c0_i32_1 = arith.constant 0 : i32
    return %c0_i32, %c0_i32_0 : i32, i32
  }
  func.func @transform_3(%arg0: i32) -> (i32, i32) {
    %c0_i32 = arith.constant 0 : i32
    %c0_i32_0 = arith.constant 0 : i32
    return %arg0, %c0_i32 : i32, i32
  }
}

</mosaic_0001>

<llo_original>
// kernel: classifier_forward.1
$region0: #{classifier_forward.1}
  #allocation0 [shape = 'u32[]', space=smem, size = 0x4, offset = 0x4, fixed_abs, tag = 'smem constant byte address 0x4 - core index']
  #allocation1 [shape = 'u32[144,128]{1,0:T(1,128)}', space=vmem, size = 0x12000, scoped, tag = 'internal scratch']
  %s0 = inlined_call_operand.hbm [shape: f32[8,256], index: 0, kind: input, shape index: {}]
  %s1 = inlined_call_operand.hbm [shape: bf16[256,128], index: 1, kind: input, shape index: {}]
  %s2 = inlined_call_operand.vmem [shape: f32[1,128], index: 2, kind: input, shape index: {}]
  %s3 = inlined_call_operand.vmem [shape: bf16[8,128], index: 3, kind: output, shape index: {}]
  %s4 = sld [smem:[#allocation0]]
  $region30: #{classifier_forward.1} parent=0
    _
  %s6 = ssub.s32 1, %s4
  %s7 = scalar_select 0, %s6, %s4
  $region1: #{classifier_forward.1} parent=0
    #allocation2 [shape = 'u8[8192]{0}', space=vmem, size = 0x2000, scoped, tag = 'input window, operand 0, single buffered']
    #allocation3 [shape = 's32[1]{0}', space=sflag, size = 0x4, scoped, tag = 'scoped memory for classifier_forward.1']
    #allocation4 [shape = 'u8[65536]{0}', space=vmem, size = 0x10000, scoped, tag = 'input window, operand 1, single buffered']
    #allocation5 [shape = 's32[1]{0}', space=sflag, size = 0x4, scoped, tag = 'scoped memory for classifier_forward.1']
    %8 = vsyncpa [#allocation3], 0
    %9 = vsyncpa [#allocation5], 0
    // Predicated region
    $region2: #{classifier_forward.1} parent=1 // pred_check
      _
    $region3: #{classifier_forward.1} parent=1 // pred_check_branch
      %11 = sbr.rel (0) target = $region5
    $region4: #{classifier_forward.1} parent=1 // pred_region
      %s13 = ssub.s32 256, 256
      %14 = vsyncadd [#allocation3], %s13
      %s16 = sshll.u32 [#allocation2], 4
      %s17 = int_to_ptr.vmem [resolvable:$true] %s16
      %19 = dma.hbm_to_vmem [thread:$0]  %s0, 256, %s17, [#allocation3]
    $region5: #{classifier_forward.1} parent=1 // pred_fallthru
      _
    // Predicated region
    $region6: #{classifier_forward.1} parent=1 // pred_check
      _
    $region7: #{classifier_forward.1} parent=1 // pred_check_branch
      %21 = sbr.rel (0) target = $region9
    $region8: #{classifier_forward.1} parent=1 // pred_region
      %s23 = ssub.s32 2048, 2048
      %24 = vsyncadd [#allocation5], %s23
      %s25 = sshll.u32 [#allocation4], 4
      %s26 = int_to_ptr.vmem [resolvable:$true] %s25
      %31 = dma.hbm_to_vmem [thread:$0]  %s1, 2048, %s26, [#allocation5], 64, 64, 4
    $region9: #{classifier_forward.1} parent=1 // pred_fallthru
      _
    // Predicated region
    $region10: #{classifier_forward.1} parent=1 // pred_check
      _
    $region11: #{classifier_forward.1} parent=1 // pred_check_branch
      %33 = sbr.rel (0) target = $region13
    $region12: #{classifier_forward.1} parent=1 // pred_region
      _
    $region13: #{classifier_forward.1} parent=1 // pred_fallthru
      _
    // Predicated region
    $region14: #{classifier_forward.1} parent=1 // pred_check
      _
    $region15: #{classifier_forward.1} parent=1 // pred_check_branch
      %35 = sbr.rel (0) target = $region17
    $region16: #{classifier_forward.1} parent=1 // pred_region
      %36 = dma.done [#allocation3], 256
    $region17: #{classifier_forward.1} parent=1 // pred_fallthru
      _
    // Predicated region
    $region18: #{classifier_forward.1} parent=1 // pred_check
      _
    $region19: #{classifier_forward.1} parent=1 // pred_check_branch
      %38 = sbr.rel (0) target = $region21
    $region20: #{classifier_forward.1} parent=1 // pred_region
      %39 = dma.done [#allocation5], 2048
    $region21: #{classifier_forward.1} parent=1 // pred_fallthru
      _
    %v41 = vld [vmem:[#allocation2] sm:$0xff]
    %v42 = vld [vmem:[#allocation2 + $0x8] sm:$0xff]
    %v43 = vpack.c.bf16 %v41, %v41
    %v44 = vpack.c.bf16 %v42, %v42
    %v45 = vld [vmem:[#allocation4] sm:$0xf]
    %v46 = vld [vmem:[#allocation4 + $0x4] sm:$0xf]
    %v47 = vld [vmem:[#allocation4 + $0x8] sm:$0xf]
    %v48 = vld [vmem:[#allocation4 + $0xc] sm:$0xf]
    %v49 = vld [vmem:[#allocation4 + $0x10] sm:$0xf]
    %v50 = vld [vmem:[#allocation4 + $0x14] sm:$0xf]
    %v51 = vld [vmem:[#allocation4 + $0x18] sm:$0xf]
    %v52 = vld [vmem:[#allocation4 + $0x1c] sm:$0xf]
    %v53 = vld [vmem:[#allocation4 + $0x20] sm:$0xf]
    %v54 = vld [vmem:[#allocation4 + $0x24] sm:$0xf]
    %v55 = vld [vmem:[#allocation4 + $0x28] sm:$0xf]
    %v56 = vld [vmem:[#allocation4 + $0x2c] sm:$0xf]
    %v57 = vld [vmem:[#allocation4 + $0x30] sm:$0xf]
    %v58 = vld [vmem:[#allocation4 + $0x34] sm:$0xf]
    %v59 = vld [vmem:[#allocation4 + $0x38] sm:$0xf]
    %v60 = vld [vmem:[#allocation4 + $0x3c] sm:$0xf]
    %v61 = vld [vmem:[#allocation4 + $0x40] sm:$0xf]
    %v62 = vld [vmem:[#allocation4 + $0x44] sm:$0xf]
    %v63 = vld [vmem:[#allocation4 + $0x48] sm:$0xf]
    %v64 = vld [vmem:[#allocation4 + $0x4c] sm:$0xf]
    %v65 = vld [vmem:[#allocation4 + $0x50] sm:$0xf]
    %v66 = vld [vmem:[#allocation4 + $0x54] sm:$0xf]
    %v67 = vld [vmem:[#allocation4 + $0x58] sm:$0xf]
    %v68 = vld [vmem:[#allocation4 + $0x5c] sm:$0xf]
    %v69 = vld [vmem:[#allocation4 + $0x60] sm:$0xf]
    %v70 = vld [vmem:[#allocation4 + $0x64] sm:$0xf]
    %v71 = vld [vmem:[#allocation4 + $0x68] sm:$0xf]
    %v72 = vld [vmem:[#allocation4 + $0x6c] sm:$0xf]
    %v73 = vld [vmem:[#allocation4 + $0x70] sm:$0xf]
    %v74 = vld [vmem:[#allocation4 + $0x74] sm:$0xf]
    %v75 = vld [vmem:[#allocation4 + $0x78] sm:$0xf]
    %v76 = vld [vmem:[#allocation4 + $0x7c] sm:$0xf]
    %v77 = vld [vmem:[%s2] sm:$0x1]
    %v79 = vlaneseq
    %v80 = vshrl.u32 %v79, 7
    %v81 = vsub.s32 0, %v80
    %v82 = vrot.slane %v77, %v81
    %v116 = vunpack.c.l.b16 %v45
    %v117 = vunpack.c.l.b16 %v46
    %v118 = vunpack.c.l.b16 %v47
    %v119 = vunpack.c.l.b16 %v48
    %v120 = vunpack.c.l.b16 %v49
    %v121 = vunpack.c.l.b16 %v50
    %v122 = vunpack.c.l.b16 %v51
    %v123 = vunpack.c.l.b16 %v52
    %v124 = vunpack.c.l.b16 %v53
    %v125 = vunpack.c.l.b16 %v54
    %v126 = vunpack.c.l.b16 %v55
    %v127 = vunpack.c.l.b16 %v56
    %v128 = vunpack.c.l.b16 %v57
    %v129 = vunpack.c.l.b16 %v58
    %v130 = vunpack.c.l.b16 %v59
    %v131 = vunpack.c.l.b16 %v60
    %v132 = vunpack.c.l.b16 %v61
    %v133 = vunpack.c.l.b16 %v62
    %v134 = vunpack.c.l.b16 %v63
    %v135 = vunpack.c.l.b16 %v64
    %v136 = vunpack.c.l.b16 %v65
    %v137 = vunpack.c.l.b16 %v66
    %v138 = vunpack.c.l.b16 %v67
    %v139 = vunpack.c.l.b16 %v68
    %v140 = vunpack.c.l.b16 %v69
    %v141 = vunpack.c.l.b16 %v70
    %v142 = vunpack.c.l.b16 %v71
    %v143 = vunpack.c.l.b16 %v72
    %v144 = vunpack.c.l.b16 %v73
    %v145 = vunpack.c.l.b16 %v74
    %v146 = vunpack.c.l.b16 %v75
    %v147 = vunpack.c.l.b16 %v76
    %v148 = vpack.c.b16 %v117, %v116
    %v149 = vpack.c.b16 %v119, %v118
    %v150 = vpack.c.b16 %v121, %v120
    %v151 = vpack.c.b16 %v123, %v122
    %v152 = vpack.c.b16 %v125, %v124
    %v153 = vpack.c.b16 %v127, %v126
    %v154 = vpack.c.b16 %v129, %v128
    %v155 = vpack.c.b16 %v131, %v130
    %v156 = vpack.c.b16 %v133, %v132
    %v157 = vpack.c.b16 %v135, %v134
    %v158 = vpack.c.b16 %v137, %v136
    %v159 = vpack.c.b16 %v139, %v138
    %v160 = vpack.c.b16 %v141, %v140
    %v161 = vpack.c.b16 %v143, %v142
    %v162 = vpack.c.b16 %v145, %v144
    %v163 = vpack.c.b16 %v147, %v146
    %180 = vmatprep.subr.bf16.mxu0 0
    %181 = vmatpush1.bf16.msra.mxu0 %v148
    %182 = vmatprep.subr.bf16.mxu0 0
    %183 = vmatpush1.bf16.msra.mxu0 %v149
    %184 = vmatprep.subr.bf16.mxu0 0
    %185 = vmatpush1.bf16.msra.mxu0 %v150
    %186 = vmatprep.subr.bf16.mxu0 0
    %187 = vmatpush1.bf16.msra.mxu0 %v151
    %188 = vmatprep.subr.bf16.mxu0 0
    %189 = vmatpush1.bf16.msra.mxu0 %v152
    %190 = vmatprep.subr.bf16.mxu0 0
    %191 = vmatpush1.bf16.msra.mxu0 %v153
    %192 = vmatprep.subr.bf16.mxu0 0
    %193 = vmatpush1.bf16.msra.mxu0 %v154
    %194 = vmatprep.subr.bf16.mxu0 0
    %195 = vmatpush1.bf16.msra.mxu0 %v155
    %196 = vmatprep.subr.bf16.mxu0 0
    %197 = vmatpush1.bf16.msra.mxu0 %v156
    %198 = vmatprep.subr.bf16.mxu0 0
    %199 = vmatpush1.bf16.msra.mxu0 %v157
    %200 = vmatprep.subr.bf16.mxu0 0
    %201 = vmatpush1.bf16.msra.mxu0 %v158
    %202 = vmatprep.subr.bf16.mxu0 0
    %203 = vmatpush1.bf16.msra.mxu0 %v159
    %204 = vmatprep.subr.bf16.mxu0 0
    %205 = vmatpush1.bf16.msra.mxu0 %v160
    %206 = vmatprep.subr.bf16.mxu0 0
    %207 = vmatpush1.bf16.msra.mxu0 %v161
    %208 = vmatprep.subr.bf16.mxu0 0
    %209 = vmatpush1.bf16.msra.mxu0 %v162
    %210 = vmatprep.subr.bf16.mxu0 0
    %211 = vmatpush1.bf16.msra.mxu0 %v163
    %212 = vmatprep.mubr.bf16.mxu0 %v44
    %213 = vmatmul.mubr.bf16.gmra.mrb[0].mxu0 %v43
    %v214 = vpop.f32.mrb[0].mxu0
    %v215 = vadd.f32 %v82, %v214
    %v216 = vpop.f32.mrb[0].mxu0
    %v217 = vpop.f32.mrb[0].mxu0
    %v218 = vpop.f32.mrb[0].mxu0
    %219 = vdwg.mxu0
    %v220 = vpack.c.bf16 %v215, %v215
    %221 = vst [vmem:[%s3] sm:$0xf] %v220
    // Predicated region
    $region22: #{classifier_forward.1} parent=1 // pred_check
      _
    $region23: #{classifier_forward.1} parent=1 // pred_check_branch
      %223 = sbr.rel (0) target = $region25
    $region24: #{classifier_forward.1} parent=1 // pred_region
      _
    $region25: #{classifier_forward.1} parent=1 // pred_fallthru
      _
    // Predicated region
    $region26: #{classifier_forward.1} parent=1 // pred_check
      _
    $region27: #{classifier_forward.1} parent=1 // pred_check_branch
      %225 = sbr.rel (0) target = $region29
    $region28: #{classifier_forward.1} parent=1 // pred_region
      _
    $region29: #{classifier_forward.1} parent=1 // pred_fallthru
      _
    %226 = vsyncpa [#allocation3], 1
    %227 = vsyncpa [#allocation5], 1

</llo_original>
